<compile_context>
chip_gen: v7x
topology: tpu7x:2x2x1
jax: 0.10.0
libtpu: 0.0.40
codegen_flags: <defaults>
</compile_context>

<pallas_src>
import functools

import jax
import jax.numpy as jnp
from jax.experimental import pallas as pl
from jax.experimental.pallas import tpu as pltpu

EPS = 1e-5          # InstanceNorm eps (PyTorch default)
SLOPE = 0.01        # LeakyReLU negative_slope


def _lrelu(y):
    return jnp.where(y >= 0, y, SLOPE * y)


def vablock_kernel(x_ref, w3_ref, w1_ref, prm_ref, mask_ref, o_ref, *, H, W):
    # x_ref   : (BT, Cin, L)       f32  flat zero-padded input, L = Hp*Wp + 2*(Wp+1)
    # w3_ref  : (2*Cout, 9*Cin)    bf16 rows [0:Cout]=conv1, [Cout:]=conv3 (block-diag dense)
    # w1_ref  : (2*Cout, 2*Cout)   bf16 block-diagonal [[w2^T, 0], [0, w4^T]]
    # prm_ref : (2*Cout, 6)        f32  cols: b13, gamma13, beta13, b24, gamma24, beta24
    # mask_ref: (1, Hp*Wp)         f32  1.0 on interior (valid) columns, 0.0 on pad columns
    # o_ref   : (BT, Cout, Hp*Wp)  f32  valid at interior columns; wrapper slices them out
    BT = x_ref.shape[0]
    Cout = o_ref.shape[1]
    Hp, Wp = H + 2, W + 2
    HPWP = Hp * Wp
    base = Wp + 1
    inv_hw = 1.0 / float(H * W)

    w3 = w3_ref[...]            # (2C, 9*Cin) bf16
    w1 = w1_ref[...]            # (2C, 2C)    bf16
    prm = prm_ref[...]          # (2C, 6)     f32
    mask = mask_ref[...]        # (1, HPWP)   f32
    b13, g13, be13 = prm[:, 0:1], prm[:, 1:2], prm[:, 2:3]
    b24, g24, be24 = prm[:, 3:4], prm[:, 4:5], prm[:, 5:6]

    def inorm(y, g, b):
        # instance norm over the valid interior columns only (biased variance)
        m = jnp.sum(y * mask, axis=1, keepdims=True) * inv_hw
        d = (y - m) * mask
        v = jnp.sum(d * d, axis=1, keepdims=True) * inv_hw
        return (y - m) * jax.lax.rsqrt(v + EPS) * g + b

    for bt in range(BT):                       # BT is static & small
        xf = x_ref[bt]                         # (Cin, L) f32
        # 9 conv taps = 9 contiguous lane slices of the flat-padded input
        taps = []
        for ky in range(3):
            for kx in range(3):
                s = base + (ky - 1) * Wp + (kx - 1)
                taps.append(xf[:, s:s + HPWP])             # (Cin, HPWP)
        residual = taps[4]                                  # centre tap == padded x, f32
        xcol = jnp.concatenate(taps, axis=0).astype(jnp.bfloat16)   # (9*Cin, HPWP)

        # fused conv1 + conv3: one K=72 MXU matmul; then fused norm1/norm3 + lrelu
        h = jnp.dot(w3, xcol, preferred_element_type=jnp.float32) + b13     # (2C, HPWP)
        h = _lrelu(inorm(h, g13, be13))
        # fused conv2 + conv4 (block-diagonal 1x1); then fused norm2/norm4
        h = jnp.dot(w1, h.astype(jnp.bfloat16),
                    preferred_element_type=jnp.float32) + b24
        h = inorm(h, g24, be24)

        # residual adds (Cin == Cout, stride 1) + final activation; lane-dense store
        o_ref[bt] = _lrelu(h[:Cout] + residual + h[Cout:])


def vablock_forward(x, w3_packed, w1_packed, prm, *, batch_tile=1):
    """x: (N, Cin, H, W) f32 (NCHW).  Returns (N, Cout, H, W) f32."""
    N, Cin, H, W = x.shape
    Cout = w3_packed.shape[0] // 2
    assert N % batch_tile == 0
    Hp, Wp = H + 2, W + 2
    HPWP = Hp * Wp
    L = HPWP + 2 * (Wp + 1)

    # Zero-pad spatially, flatten HW, then pad the flat axis so every 3x3 tap
    # becomes a contiguous (unaligned) lane slice of length Hp*Wp.
    # TODO(synk): at production sizes fold this prep into the kernel (halo'd
    # row-band grid + two-pass instance norm + explicit vmem_limit_bytes)
    # instead of an extra HBM traversal.
    x_pad = jnp.pad(x, ((0, 0), (0, 0), (1, 1), (1, 1)))
    x_ext = jnp.pad(x_pad.reshape(N, Cin, HPWP),
                    ((0, 0), (0, 0), (Wp + 1, Wp + 1)))            # (N, Cin, L)

    # Interior-validity mask over the padded (flattened) spatial grid.
    pos = jnp.arange(HPWP)
    hh, ww = pos // Wp, pos % Wp
    mask = (((hh >= 1) & (hh <= H) & (ww >= 1) & (ww <= W))
            .astype(jnp.float32).reshape(1, HPWP))

    out = pl.pallas_call(
        functools.partial(vablock_kernel, H=H, W=W),
        out_shape=jax.ShapeDtypeStruct((N, Cout, HPWP), jnp.float32),
        grid=(N // batch_tile,),
        in_specs=[
            pl.BlockSpec((batch_tile, Cin, L), lambda n: (n, 0, 0)),
            pl.BlockSpec(w3_packed.shape, lambda n: (0, 0)),
            pl.BlockSpec(w1_packed.shape, lambda n: (0, 0)),
            pl.BlockSpec(prm.shape, lambda n: (0, 0)),
            pl.BlockSpec((1, HPWP), lambda n: (0, 0)),
        ],
        out_specs=pl.BlockSpec((batch_tile, Cout, HPWP), lambda n: (n, 0, 0)),
        compiler_params=pltpu.CompilerParams(
            dimension_semantics=("parallel",)),   # v7x megacore; harmless on v5e/v6e
    )(x_ext, w3_packed, w1_packed, prm, mask)

    # Slice the valid interior back out (border columns are junk by design).
    return out.reshape(N, Cout, Hp, Wp)[:, :, 1:1 + H, 1:1 + W]


# ---------------------------- pure-JAX reference ----------------------------
def ref_forward(x, p):
    """x: (N, H, W, Cin) NHWC, all-f32 reference."""
    def conv(inp, w_hwio, b, pad, groups=1):
        y = jax.lax.conv_general_dilated(
            inp, w_hwio, (1, 1), [(pad, pad), (pad, pad)],
            dimension_numbers=("NHWC", "HWIO", "NHWC"),
            feature_group_count=groups,
            precision=jax.lax.Precision.HIGHEST)
        return y + b

    def inorm(y, g, b):
        m = y.mean(axis=(1, 2), keepdims=True)
        v = ((y - m) ** 2).mean(axis=(1, 2), keepdims=True)
        return (y - m) / jnp.sqrt(v + EPS) * g + b

    out = conv(x, p["w1"], p["b1"], 1)
    out = _lrelu(inorm(out, p["g1"], p["be1"]))
    out = conv(out, p["w2"][None, None], p["b2"], 0)
    out = inorm(out, p["g2"], p["be2"])

    out1 = conv(x, p["w3g"], p["b3"], 1, groups=p["groups"])
    out1 = _lrelu(inorm(out1, p["g3"], p["be3"]))
    out1 = conv(out1, p["w4"][None, None], p["b4"], 0)
    out1 = inorm(out1, p["g4"], p["be4"])

    return _lrelu((out + x) + out1)


if __name__ == "__main__":
    N, H, W = 2, 16, 16
    Cin = Cout = 8
    groups = 2
    cin_g = Cin // groups
    cout_g = Cout // groups

    key = jax.random.PRNGKey(0)
    ks = jax.random.split(key, 20)
    nrm = lambda k, s: 0.1 * jax.random.normal(k, s, jnp.float32)

    x = jax.random.normal(ks[0], (N, Cin, H, W), jnp.float32)     # NCHW

    w1 = nrm(ks[1], (3, 3, Cin, Cout))      # conv1 3x3 (HWIO)
    b1 = nrm(ks[2], (Cout,))
    w2 = nrm(ks[3], (Cout, Cout))           # conv2 1x1  (cin, cout)
    b2 = nrm(ks[4], (Cout,))
    w3g = nrm(ks[5], (3, 3, cin_g, Cout))   # conv3 3x3 grouped (HWIO, Cin/groups)
    b3 = nrm(ks[6], (Cout,))
    w4 = nrm(ks[7], (Cout, Cout))           # conv4 1x1
    b4 = nrm(ks[8], (Cout,))
    g1, g2, g3, g4 = (1.0 + nrm(ks[9 + i], (Cout,)) for i in range(4))
    be1, be2, be3, be4 = (nrm(ks[13 + i], (Cout,)) for i in range(4))

    # ---- wrapper glue: pack parameters for the fused kernel ----
    # grouped conv3 weight -> dense block-diagonal (3,3,Cin,Cout)
    w3_dense = jnp.zeros((3, 3, Cin, Cout), jnp.float32)
    for g in range(groups):
        w3_dense = w3_dense.at[:, :, g * cin_g:(g + 1) * cin_g,
                               g * cout_g:(g + 1) * cout_g].set(
            w3g[:, :, :, g * cout_g:(g + 1) * cout_g])

    # (2*Cout, 9*Cin): contraction index = (ky*3+kx)*Cin + ci (matches xcol order)
    wA = jnp.transpose(w1, (3, 0, 1, 2)).reshape(Cout, 9 * Cin)
    wB = jnp.transpose(w3_dense, (3, 0, 1, 2)).reshape(Cout, 9 * Cin)
    w3_packed = jnp.concatenate([wA, wB], axis=0).astype(jnp.bfloat16)

    # block-diagonal fused 1x1 weight (2*Cout, 2*Cout); rows = output channels
    w1_bd = jnp.zeros((2 * Cout, 2 * Cout), jnp.float32)
    w1_bd = w1_bd.at[:Cout, :Cout].set(w2.T)
    w1_bd = w1_bd.at[Cout:, Cout:].set(w4.T)
    w1_packed = w1_bd.astype(jnp.bfloat16)

    # per-channel params as lane-broadcastable columns: (2*Cout, 6)
    prm = jnp.stack([
        jnp.concatenate([b1, b3]),
        jnp.concatenate([g1, g3]),
        jnp.concatenate([be1, be3]),
        jnp.concatenate([b2, b4]),
        jnp.concatenate([g2, g4]),
        jnp.concatenate([be2, be4]),
    ], axis=1)

    y = jax.block_until_ready(
        vablock_forward(x, w3_packed, w1_packed, prm, batch_tile=1))

    p = dict(w1=w1, b1=b1, w2=w2, b2=b2, w3g=w3g, b3=b3, w4=w4, b4=b4,
             g1=g1, g2=g2, g3=g3, g4=g4, be1=be1, be2=be2, be3=be3, be4=be4,
             groups=groups)
    x_nhwc = jnp.transpose(x, (0, 2, 3, 1))
    y_ref = jnp.transpose(ref_forward(x_nhwc, p), (0, 3, 1, 2))   # back to NCHW
    y_ref = jax.block_until_ready(y_ref)

    assert y.shape == (N, Cout, H, W)
    # tolerance sized for bf16 MXU inputs vs the all-f32 reference
    assert jnp.allclose(y, y_ref, atol=3e-2, rtol=3e-2), \
        f"max abs diff {float(jnp.max(jnp.abs(y - y_ref)))}"
    print("KERNEL_OK")
</pallas_src>

<mosaic_0001>
module attributes {stable_mosaic.version = 11 : i64} {
  func.func @vablock_kernel(%arg0: i32, %arg1: memref<1x8x362xf32, #tpu.memory_space<vmem>>, %arg2: memref<16x72xbf16, #tpu.memory_space<vmem>>, %arg3: memref<16x16xbf16, #tpu.memory_space<vmem>>, %arg4: memref<16x6xf32, #tpu.memory_space<vmem>>, %arg5: memref<1x324xf32, #tpu.memory_space<vmem>>, %arg6: memref<1x8x324xf32, #tpu.memory_space<vmem>>) attributes {dimension_semantics = [#tpu.dimension_semantics<parallel>], iteration_bounds = array<i64: 2>, scalar_prefetch = 0 : i64, scratch_operands = 0 : i64, tpu.core_type = #tpu.core_type<tc>, window_params = [{transform_indices = @transform_0, window_bounds = array<i64: 1, 8, 362>}, {pipeline_mode = #tpu.pipeline_mode<synchronous>, transform_indices = @transform_1, window_bounds = array<i64: 16, 72>}, {pipeline_mode = #tpu.pipeline_mode<synchronous>, transform_indices = @transform_2, window_bounds = array<i64: 16, 16>}, {pipeline_mode = #tpu.pipeline_mode<synchronous>, transform_indices = @transform_3, window_bounds = array<i64: 16, 6>}, {pipeline_mode = #tpu.pipeline_mode<synchronous>, transform_indices = @transform_4, window_bounds = array<i64: 1, 324>}, {transform_indices = @transform_5, window_bounds = array<i64: 1, 8, 324>}]} {
    %c0 = arith.constant 0 : index
    %c0_0 = arith.constant 0 : index
    %0 = vector.load %arg2[%c0, %c0_0] : memref<16x72xbf16, #tpu.memory_space<vmem>>, vector<16x72xbf16>
    %c0_1 = arith.constant 0 : index
    %c0_2 = arith.constant 0 : index
    %1 = vector.load %arg3[%c0_1, %c0_2] : memref<16x16xbf16, #tpu.memory_space<vmem>>, vector<16x16xbf16>
    %c0_3 = arith.constant 0 : index
    %c0_4 = arith.constant 0 : index
    %2 = vector.load %arg4[%c0_3, %c0_4] : memref<16x6xf32, #tpu.memory_space<vmem>>, vector<16x6xf32>
    %c0_5 = arith.constant 0 : index
    %c0_6 = arith.constant 0 : index
    %3 = vector.load %arg5[%c0_5, %c0_6] : memref<1x324xf32, #tpu.memory_space<vmem>>, vector<1x324xf32>
    %4 = vector.extract_strided_slice %2 {offsets = [0, 0], sizes = [16, 1], strides = [1, 1]} : vector<16x6xf32> to vector<16x1xf32>
    %5 = vector.extract_strided_slice %2 {offsets = [0, 1], sizes = [16, 1], strides = [1, 1]} : vector<16x6xf32> to vector<16x1xf32>
    %6 = vector.extract_strided_slice %2 {offsets = [0, 2], sizes = [16, 1], strides = [1, 1]} : vector<16x6xf32> to vector<16x1xf32>
    %7 = vector.extract_strided_slice %2 {offsets = [0, 3], sizes = [16, 1], strides = [1, 1]} : vector<16x6xf32> to vector<16x1xf32>
    %8 = vector.extract_strided_slice %2 {offsets = [0, 4], sizes = [16, 1], strides = [1, 1]} : vector<16x6xf32> to vector<16x1xf32>
    %9 = vector.extract_strided_slice %2 {offsets = [0, 5], sizes = [16, 1], strides = [1, 1]} : vector<16x6xf32> to vector<16x1xf32>
    %c0_7 = arith.constant 0 : index
    %c0_8 = arith.constant 0 : index
    %c0_9 = arith.constant 0 : index
    %10 = vector.load %arg1[%c0_7, %c0_8, %c0_9] : memref<1x8x362xf32, #tpu.memory_space<vmem>>, vector<1x8x362xf32>
    %11 = vector.shape_cast %10 : vector<1x8x362xf32> to vector<8x362xf32>
    %12 = vector.extract_strided_slice %11 {offsets = [0, 0], sizes = [8, 324], strides = [1, 1]} : vector<8x362xf32> to vector<8x324xf32>
    %13 = vector.extract_strided_slice %11 {offsets = [0, 1], sizes = [8, 324], strides = [1, 1]} : vector<8x362xf32> to vector<8x324xf32>
    %14 = vector.extract_strided_slice %11 {offsets = [0, 2], sizes = [8, 324], strides = [1, 1]} : vector<8x362xf32> to vector<8x324xf32>
    %15 = vector.extract_strided_slice %11 {offsets = [0, 18], sizes = [8, 324], strides = [1, 1]} : vector<8x362xf32> to vector<8x324xf32>
    %16 = vector.extract_strided_slice %11 {offsets = [0, 19], sizes = [8, 324], strides = [1, 1]} : vector<8x362xf32> to vector<8x324xf32>
    %17 = vector.extract_strided_slice %11 {offsets = [0, 20], sizes = [8, 324], strides = [1, 1]} : vector<8x362xf32> to vector<8x324xf32>
    %18 = vector.extract_strided_slice %11 {offsets = [0, 36], sizes = [8, 324], strides = [1, 1]} : vector<8x362xf32> to vector<8x324xf32>
    %19 = vector.extract_strided_slice %11 {offsets = [0, 37], sizes = [8, 324], strides = [1, 1]} : vector<8x362xf32> to vector<8x324xf32>
    %20 = vector.extract_strided_slice %11 {offsets = [0, 38], sizes = [8, 324], strides = [1, 1]} : vector<8x362xf32> to vector<8x324xf32>
    %21 = tpu.concatenate %12, %13, %14, %15, %16, %17, %18, %19, %20 in 0 : vector<8x324xf32>, vector<8x324xf32>, vector<8x324xf32>, vector<8x324xf32>, vector<8x324xf32>, vector<8x324xf32>, vector<8x324xf32>, vector<8x324xf32>, vector<8x324xf32> -> vector<72x324xf32>
    %22 = arith.truncf %21 : vector<72x324xf32> to vector<72x324xbf16>
    %cst = arith.constant dense<0.000000e+00> : vector<16x324xf32>
    %23 = tpu.matmul %0, %22, %cst {dimension_numbers = #tpu.dot_dimension_numbers<[1], [0], [0], [1], [0, 0, 1, 1], [], []>} : vector<16x72xbf16>, vector<72x324xbf16>, vector<16x324xf32> -> vector<16x324xf32>
    %24 = vector.broadcast %4 : vector<16x1xf32> to vector<16x324xf32>
    %25 = arith.addf %23, %24 : vector<16x324xf32>
    %26 = vector.broadcast %3 : vector<1x324xf32> to vector<16x324xf32>
    %27 = arith.mulf %25, %26 : vector<16x324xf32>
    %cst_10 = arith.constant dense<0.000000e+00> : vector<16xf32>
    %28 = vector.multi_reduction <add>, %27, %cst_10 [1] : vector<16x324xf32> to vector<16xf32>
    %29 = vector.shape_cast %28 : vector<16xf32> to vector<16x1xf32>
    %cst_11 = arith.constant 3.906250e-03 : f32
    %30 = vector.broadcast %cst_11 : f32 to vector<16x1xf32>
    %31 = arith.mulf %29, %30 : vector<16x1xf32>
    %32 = vector.broadcast %31 : vector<16x1xf32> to vector<16x324xf32>
    %33 = arith.subf %25, %32 : vector<16x324xf32>
    %34 = vector.broadcast %3 : vector<1x324xf32> to vector<16x324xf32>
    %35 = arith.mulf %33, %34 : vector<16x324xf32>
    %36 = arith.mulf %35, %35 : vector<16x324xf32>
    %cst_12 = arith.constant dense<0.000000e+00> : vector<16xf32>
    %37 = vector.multi_reduction <add>, %36, %cst_12 [1] : vector<16x324xf32> to vector<16xf32>
    %38 = vector.shape_cast %37 : vector<16xf32> to vector<16x1xf32>
    %cst_13 = arith.constant 3.906250e-03 : f32
    %39 = vector.broadcast %cst_13 : f32 to vector<16x1xf32>
    %40 = arith.mulf %38, %39 : vector<16x1xf32>
    %41 = vector.broadcast %31 : vector<16x1xf32> to vector<16x324xf32>
    %42 = arith.subf %25, %41 : vector<16x324xf32>
    %cst_14 = arith.constant 9.99999974E-6 : f32
    %43 = vector.broadcast %cst_14 : f32 to vector<16x1xf32>
    %44 = arith.addf %40, %43 : vector<16x1xf32>
    %45 = math.rsqrt %44 : vector<16x1xf32>
    %46 = vector.broadcast %45 : vector<16x1xf32> to vector<16x324xf32>
    %47 = arith.mulf %42, %46 : vector<16x324xf32>
    %48 = vector.broadcast %5 : vector<16x1xf32> to vector<16x324xf32>
    %49 = arith.mulf %47, %48 : vector<16x324xf32>
    %50 = vector.broadcast %6 : vector<16x1xf32> to vector<16x324xf32>
    %51 = arith.addf %49, %50 : vector<16x324xf32>
    %cst_15 = arith.constant 0.000000e+00 : f32
    %52 = vector.broadcast %cst_15 : f32 to vector<16x324xf32>
    %53 = arith.cmpf oge, %51, %52 : vector<16x324xf32>
    %cst_16 = arith.constant 0.00999999977 : f32
    %54 = vector.broadcast %cst_16 : f32 to vector<16x324xf32>
    %55 = arith.mulf %54, %51 : vector<16x324xf32>
    %56 = arith.select %53, %51, %55 : vector<16x324xi1>, vector<16x324xf32>
    %57 = arith.truncf %56 : vector<16x324xf32> to vector<16x324xbf16>
    %cst_17 = arith.constant dense<0.000000e+00> : vector<16x324xf32>
    %58 = tpu.matmul %1, %57, %cst_17 {dimension_numbers = #tpu.dot_dimension_numbers<[1], [0], [0], [1], [0, 0, 1, 1], [], []>} : vector<16x16xbf16>, vector<16x324xbf16>, vector<16x324xf32> -> vector<16x324xf32>
    %59 = vector.broadcast %7 : vector<16x1xf32> to vector<16x324xf32>
    %60 = arith.addf %58, %59 : vector<16x324xf32>
    %61 = vector.broadcast %3 : vector<1x324xf32> to vector<16x324xf32>
    %62 = arith.mulf %60, %61 : vector<16x324xf32>
    %cst_18 = arith.constant dense<0.000000e+00> : vector<16xf32>
    %63 = vector.multi_reduction <add>, %62, %cst_18 [1] : vector<16x324xf32> to vector<16xf32>
    %64 = vector.shape_cast %63 : vector<16xf32> to vector<16x1xf32>
    %cst_19 = arith.constant 3.906250e-03 : f32
    %65 = vector.broadcast %cst_19 : f32 to vector<16x1xf32>
    %66 = arith.mulf %64, %65 : vector<16x1xf32>
    %67 = vector.broadcast %66 : vector<16x1xf32> to vector<16x324xf32>
    %68 = arith.subf %60, %67 : vector<16x324xf32>
    %69 = vector.broadcast %3 : vector<1x324xf32> to vector<16x324xf32>
    %70 = arith.mulf %68, %69 : vector<16x324xf32>
    %71 = arith.mulf %70, %70 : vector<16x324xf32>
    %cst_20 = arith.constant dense<0.000000e+00> : vector<16xf32>
    %72 = vector.multi_reduction <add>, %71, %cst_20 [1] : vector<16x324xf32> to vector<16xf32>
    %73 = vector.shape_cast %72 : vector<16xf32> to vector<16x1xf32>
    %cst_21 = arith.constant 3.906250e-03 : f32
    %74 = vector.broadcast %cst_21 : f32 to vector<16x1xf32>
    %75 = arith.mulf %73, %74 : vector<16x1xf32>
    %76 = vector.broadcast %66 : vector<16x1xf32> to vector<16x324xf32>
    %77 = arith.subf %60, %76 : vector<16x324xf32>
    %cst_22 = arith.constant 9.99999974E-6 : f32
    %78 = vector.broadcast %cst_22 : f32 to vector<16x1xf32>
    %79 = arith.addf %75, %78 : vector<16x1xf32>
    %80 = math.rsqrt %79 : vector<16x1xf32>
    %81 = vector.broadcast %80 : vector<16x1xf32> to vector<16x324xf32>
    %82 = arith.mulf %77, %81 : vector<16x324xf32>
    %83 = vector.broadcast %8 : vector<16x1xf32> to vector<16x324xf32>
    %84 = arith.mulf %82, %83 : vector<16x324xf32>
    %85 = vector.broadcast %9 : vector<16x1xf32> to vector<16x324xf32>
    %86 = arith.addf %84, %85 : vector<16x324xf32>
    %87 = vector.extract_strided_slice %86 {offsets = [0, 0], sizes = [8, 324], strides = [1, 1]} : vector<16x324xf32> to vector<8x324xf32>
    %88 = arith.addf %87, %16 : vector<8x324xf32>
    %89 = vector.extract_strided_slice %86 {offsets = [8, 0], sizes = [8, 324], strides = [1, 1]} : vector<16x324xf32> to vector<8x324xf32>
    %90 = arith.addf %88, %89 : vector<8x324xf32>
    %cst_23 = arith.constant 0.000000e+00 : f32
    %91 = vector.broadcast %cst_23 : f32 to vector<8x324xf32>
    %92 = arith.cmpf oge, %90, %91 : vector<8x324xf32>
    %cst_24 = arith.constant 0.00999999977 : f32
    %93 = vector.broadcast %cst_24 : f32 to vector<8x324xf32>
    %94 = arith.mulf %93, %90 : vector<8x324xf32>
    %95 = arith.select %92, %90, %94 : vector<8x324xi1>, vector<8x324xf32>
    %c0_25 = arith.constant 0 : index
    %c0_26 = arith.constant 0 : index
    %c0_27 = arith.constant 0 : index
    %96 = vector.load %arg6[%c0_25, %c0_26, %c0_27] : memref<1x8x324xf32, #tpu.memory_space<vmem>>, vector<1x8x324xf32>
    %97 = vector.shape_cast %96 : vector<1x8x324xf32> to vector<8x324xf32>
    %98 = vector.shape_cast %95 : vector<8x324xf32> to vector<1x8x324xf32>
    tpu.vector_store %arg6[%c0_25, %c0_26, %c0_27], %98 {strides = array<i32>} : memref<1x8x324xf32, #tpu.memory_space<vmem>>, vector<1x8x324xf32>,
    return
  }
  func.func @transform_0(%arg0: i32) -> (i32, i32, i32) {
    %c0_i32 = arith.constant 0 : i32
    %c0_i32_0 = arith.constant 0 : i32
    %c0_i32_1 = arith.constant 0 : i32
    return %arg0, %c0_i32, %c0_i32_0 : i32, i32, i32
  }
  func.func @transform_1(%arg0: i32) -> (i32, i32) {
    %c0_i32 = arith.constant 0 : i32
    %c0_i32_0 = arith.constant 0 : i32
    %c0_i32_1 = arith.constant 0 : i32
    return %c0_i32, %c0_i32_0 : i32, i32
  }
  func.func @transform_2(%arg0: i32) -> (i32, i32) {
    %c0_i32 = arith.constant 0 : i32
    %c0_i32_0 = arith.constant 0 : i32
    %c0_i32_1 = arith.constant 0 : i32
    return %c0_i32, %c0_i32_0 : i32, i32
  }
  func.func @transform_3(%arg0: i32) -> (i32, i32) {
    %c0_i32 = arith.constant 0 : i32
    %c0_i32_0 = arith.constant 0 : i32
    %c0_i32_1 = arith.constant 0 : i32
    return %c0_i32, %c0_i32_0 : i32, i32
  }
  func.func @transform_4(%arg0: i32) -> (i32, i32) {
    %c0_i32 = arith.constant 0 : i32
    %c0_i32_0 = arith.constant 0 : i32
    %c0_i32_1 = arith.constant 0 : i32
    return %c0_i32, %c0_i32_0 : i32, i32
  }
  func.func @transform_5(%arg0: i32) -> (i32, i32, i32) {
    %c0_i32 = arith.constant 0 : i32
    %c0_i32_0 = arith.constant 0 : i32
    %c0_i32_1 = arith.constant 0 : i32
    return %arg0, %c0_i32, %c0_i32_0 : i32, i32, i32
  }
}

</mosaic_0001>

<llo_original>
// kernel: tpu_custom_call.1
$region0: #{tpu_custom_call.1}
  #allocation0 [shape = 'u32[]', space=smem, size = 0x4, offset = 0x4, fixed_abs, tag = 'smem constant byte address 0x4 - core index']
  #allocation1 [shape = 'u32[144,128]{1,0:T(1,128)}', space=vmem, size = 0x12000, scoped, tag = 'internal scratch']
  %s0 = inlined_call_operand.hbm [shape: f32[2,8,362], index: 0, kind: input, shape index: {}]
  %s1 = inlined_call_operand.vmem [shape: bf16[16,72], index: 1, kind: input, shape index: {}]
  %s2 = inlined_call_operand.vmem [shape: bf16[16,16], index: 2, kind: input, shape index: {}]
  %s3 = inlined_call_operand.vmem [shape: f32[16,6], index: 3, kind: input, shape index: {}]
  %s4 = inlined_call_operand.vmem [shape: f32[1,324], index: 4, kind: input, shape index: {}]
  %s5 = inlined_call_operand.hbm [shape: f32[2,8,324], index: 5, kind: output, shape index: {}]
  %s6 = sld [smem:[#allocation0]]
  $region57: #{tpu_custom_call.1} parent=0
    _
  %s8 = ssub.s32 1, %s6
  %s9 = scalar_select 0, %s8, %s6
  $region1: #{tpu_custom_call.1} parent=0
    #allocation2 [shape = 'u8[24576]{0}', space=vmem, size = 0x6000, scoped, tag = 'input window, operand 0']
    #allocation3 [shape = 's32[2]{0}', space=sflag, size = 0x8, scoped, tag = 'scoped memory for tpu_custom_call.1']
    #allocation4 [shape = 's32[2]{0}', space=sflag, size = 0x8, scoped, tag = 'scoped memory for tpu_custom_call.1']
    #allocation5 [shape = 'u8[24576]{0}', space=vmem, size = 0x6000, scoped, tag = 'output window, operand 0']
    %10 = vsyncpa [#allocation3], 0
    %s11 = scalar_lea.sflag [#allocation3], 1
    %12 = vsyncpa %s11, 0
    %13 = vsyncpa [#allocation4], 0
    %s14 = scalar_lea.sflag [#allocation4], 1
    %15 = vsyncpa %s14, 0
    loop: start=0, step=1, limit=4
    $region2: #{tpu_custom_call.1} parent=1 // loop_pre_header
      _
    $region3: #{tpu_custom_call.1} parent=1 // loop_header
      %s17 = sphi 0, %s21
      %p18 = scmp.ge.s32.totalorder %s17, 4
      %s27 = sphi 0, %s29
      %s30 = sphi 0, %s27
      %s31 = sphi 0, %s30
      %s47 = sphi 0, %s31
      %s51 = sphi 0, %s51
      %s53 = sphi 0, %s51
      %s54 = sphi 0, %s53
      %s68 = sphi 0, %s54
      %s72 = sphi 0, %s72
      %s74 = sphi 0, %s72
      %s75 = sphi 0, %s74
      %s89 = sphi 0, %s75
      %s93 = sphi 0, %s93
      %s95 = sphi 0, %s93
      %s96 = sphi 0, %s95
      %s110 = sphi 0, %s96
      %s114 = sphi 0, %s114
      %s116 = sphi 0, %s114
      %s117 = sphi 0, %s116
      %s131 = sphi 0, %s117
      %s137 = sphi 0, %s139
      %s140 = sphi 0, %s137
      %s141 = sphi 0, %s140
      %s157 = sphi 0, %s141
    $region4: #{tpu_custom_call.1} parent=1 // loop_header_branch
      %20 = sbr.rel (%p18) target = $region8
    $region5: #{tpu_custom_call.1} parent=1 // loop_body
      %s22 = ssub.s32 %s17, 1
      %s23 = ssub.s32 %s17, 2
      %s24 = sadd.s32 %s17, 1
      %s25 = ssub.s32 %s17, %s24
      %p26 = scmp.eq.s32.totalorder %s25, 0
      %s28 = sadd.s32 %s27, 1
      %s29 = scalar_select %p26, %s27, %s28
      %p32 = pneg %p26
      %p33 = scmp.eq.s32.totalorder %s17, 1
      %p34 = por %p32, %p33
      %p35 = scmp.ne.s32.totalorder %s27, %s30
      %p36 = scmp.eq.s32.totalorder %s17, 0
      %p37 = por %p35, %p36
      %p38 = scmp.ne.s32.totalorder %s27, %s30
      %p39 = scmp.eq.s32.totalorder %s22, 1
      %p40 = por %p38, %p39
      %p41 = scmp.ne.s32.totalorder %s30, %s31
      %p42 = scmp.eq.s32.totalorder %s22, 0
      %p43 = por %p41, %p42
      %p44 = scmp.ne.s32.totalorder %s30, %s31
      %p45 = scmp.eq.s32.totalorder %s23, 1
      %p46 = por %p44, %p45
      %p48 = scmp.ne.s32.totalorder %s31, %s47
      %p49 = scmp.eq.s32.totalorder %s23, 0
      %p50 = por %p48, %p49
      %s52 = sadd.s32 %s51, 1
      %p55 = scmp.eq.s32.totalorder %s17, 1
      %p56 = scmp.ne.s32.totalorder %s51, %s53
      %p57 = scmp.eq.s32.totalorder %s17, 0
      %p58 = por %p56, %p57
      %p59 = scmp.ne.s32.totalorder %s51, %s53
      %p60 = scmp.eq.s32.totalorder %s22, 1
      %p61 = por %p59, %p60
      %p62 = scmp.ne.s32.totalorder %s53, %s54
      %p63 = scmp.eq.s32.totalorder %s22, 0
      %p64 = por %p62, %p63
      %p65 = scmp.ne.s32.totalorder %s53, %s54
      %p66 = scmp.eq.s32.totalorder %s23, 1
      %p67 = por %p65, %p66
      %p69 = scmp.ne.s32.totalorder %s54, %s68
      %p70 = scmp.eq.s32.totalorder %s23, 0
      %p71 = por %p69, %p70
      %s73 = sadd.s32 %s72, 1
      %p76 = scmp.eq.s32.totalorder %s17, 1
      %p77 = scmp.ne.s32.totalorder %s72, %s74
      %p78 = scmp.eq.s32.totalorder %s17, 0
      %p79 = por %p77, %p78
      %p80 = scmp.ne.s32.totalorder %s72, %s74
      %p81 = scmp.eq.s32.totalorder %s22, 1
      %p82 = por %p80, %p81
      %p83 = scmp.ne.s32.totalorder %s74, %s75
      %p84 = scmp.eq.s32.totalorder %s22, 0
      %p85 = por %p83, %p84
      %p86 = scmp.ne.s32.totalorder %s74, %s75
      %p87 = scmp.eq.s32.totalorder %s23, 1
      %p88 = por %p86, %p87
      %p90 = scmp.ne.s32.totalorder %s75, %s89
      %p91 = scmp.eq.s32.totalorder %s23, 0
      %p92 = por %p90, %p91
      %s94 = sadd.s32 %s93, 1
      %p97 = scmp.eq.s32.totalorder %s17, 1
      %p98 = scmp.ne.s32.totalorder %s93, %s95
      %p99 = scmp.eq.s32.totalorder %s17, 0
      %p100 = por %p98, %p99
      %p101 = scmp.ne.s32.totalorder %s93, %s95
      %p102 = scmp.eq.s32.totalorder %s22, 1
      %p103 = por %p101, %p102
      %p104 = scmp.ne.s32.totalorder %s95, %s96
      %p105 = scmp.eq.s32.totalorder %s22, 0
      %p106 = por %p104, %p105
      %p107 = scmp.ne.s32.totalorder %s95, %s96
      %p108 = scmp.eq.s32.totalorder %s23, 1
      %p109 = por %p107, %p108
      %p111 = scmp.ne.s32.totalorder %s96, %s110
      %p112 = scmp.eq.s32.totalorder %s23, 0
      %p113 = por %p111, %p112
      %s115 = sadd.s32 %s114, 1
      %p118 = scmp.eq.s32.totalorder %s17, 1
      %p119 = scmp.ne.s32.totalorder %s114, %s116
      %p120 = scmp.eq.s32.totalorder %s17, 0
      %p121 = por %p119, %p120
      %p122 = scmp.ne.s32.totalorder %s114, %s116
      %p123 = scmp.eq.s32.totalorder %s22, 1
      %p124 = por %p122, %p123
      %p125 = scmp.ne.s32.totalorder %s116, %s117
      %p126 = scmp.eq.s32.totalorder %s22, 0
      %p127 = por %p125, %p126
      %p128 = scmp.ne.s32.totalorder %s116, %s117
      %p129 = scmp.eq.s32.totalorder %s23, 1
      %p130 = por %p128, %p129
      %p132 = scmp.ne.s32.totalorder %s117, %s131
      %p133 = scmp.eq.s32.totalorder %s23, 0
      %p134 = por %p132, %p133
      %s135 = ssub.s32 %s17, %s24
      %p136 = scmp.eq.s32.totalorder %s135, 0
      %s138 = sadd.s32 %s137, 1
      %s139 = scalar_select %p136, %s137, %s138
      %p142 = pneg %p136
      %p143 = scmp.eq.s32.totalorder %s17, 1
      %p144 = por %p142, %p143
      %p145 = scmp.ne.s32.totalorder %s137, %s140
      %p146 = scmp.eq.s32.totalorder %s17, 0
      %p147 = por %p145, %p146
      %p148 = scmp.ne.s32.totalorder %s137, %s140
      %p149 = scmp.eq.s32.totalorder %s22, 1
      %p150 = por %p148, %p149
      %p151 = scmp.ne.s32.totalorder %s140, %s141
      %p152 = scmp.eq.s32.totalorder %s22, 0
      %p153 = por %p151, %p152
      %p154 = scmp.ne.s32.totalorder %s140, %s141
      %p155 = scmp.eq.s32.totalorder %s23, 1
      %p156 = por %p154, %p155
      %p158 = scmp.ne.s32.totalorder %s141, %s157
      %p159 = scmp.eq.s32.totalorder %s23, 0
      %p160 = por %p158, %p159
      %p161 = scmp.le.s32.totalorder 1, %s17
      %p162 = scmp.lt.s32.totalorder %s17, 3
      %p163 = pnand %p161, %p162
      %p164 = pneg %p163
      // Predicated region
      $region9: #{tpu_custom_call.1} parent=5 // pred_check
        _
      $region10: #{tpu_custom_call.1} parent=5 // pred_check_branch
        %166 = sbr.rel (%p163) target = $region12
      $region11: #{tpu_custom_call.1} parent=5 // pred_region
        %s167 = ssub.s32 %s17, 1
        // Predicated region
        $region13: #{tpu_custom_call.1} parent=11 // pred_check
          %p168 = pneg %p64
        $region14: #{tpu_custom_call.1} parent=11 // pred_check_branch
          %170 = sbr.rel (%p168) target = $region16
        $region15: #{tpu_custom_call.1} parent=11 // pred_region
          _
        $region16: #{tpu_custom_call.1} parent=11 // pred_fallthru
          _
        // Predicated region
        $region17: #{tpu_custom_call.1} parent=11 // pred_check
          %p171 = pneg %p85
        $region18: #{tpu_custom_call.1} parent=11 // pred_check_branch
          %173 = sbr.rel (%p171) target = $region20
        $region19: #{tpu_custom_call.1} parent=11 // pred_region
          _
        $region20: #{tpu_custom_call.1} parent=11 // pred_fallthru
          _
        // Predicated region
        $region21: #{tpu_custom_call.1} parent=11 // pred_check
          %p174 = pneg %p106
        $region22: #{tpu_custom_call.1} parent=11 // pred_check_branch
          %176 = sbr.rel (%p174) target = $region24
        $region23: #{tpu_custom_call.1} parent=11 // pred_region
          _
        $region24: #{tpu_custom_call.1} parent=11 // pred_fallthru
          _
        // Predicated region
        $region25: #{tpu_custom_call.1} parent=11 // pred_check
          %p177 = pneg %p127
        $region26: #{tpu_custom_call.1} parent=11 // pred_check_branch
          %179 = sbr.rel (%p177) target = $region28
        $region27: #{tpu_custom_call.1} parent=11 // pred_region
          _
        $region28: #{tpu_custom_call.1} parent=11 // pred_fallthru
          _
      $region12: #{tpu_custom_call.1} parent=5 // pred_fallthru
        _
      %p180 = scmp.lt.s32.totalorder %s17, 2
      // Predicated region
      $region29: #{tpu_custom_call.1} parent=5 // pred_check
        %p181 = pneg %p180
      $region30: #{tpu_custom_call.1} parent=5 // pred_check_branch
        %183 = sbr.rel (%p181) target = $region32
      $region31: #{tpu_custom_call.1} parent=5 // pred_region
        // Predicated region
        $region33: #{tpu_custom_call.1} parent=31 // pred_check
          %p184 = pneg %p37
        $region34: #{tpu_custom_call.1} parent=31 // pred_check_branch
          %186 = sbr.rel (%p184) target = $region36
        $region35: #{tpu_custom_call.1} parent=31 // pred_region
          %s187 = sand.u32 %s27, 1
          %s188 = scalar_lea.sflag [#allocation3], %s187
          %s189 = sand.u32 %s27, 1
          %s190 = smul.addr %s189, 24
          %s191 = scalar_lea.vmem [#allocation2], %s190
          %s193 = ssub.s32 384, 384
          %194 = vsyncadd %s188, %s193
          %s195 = smul.addr %s17, 3
          %s196 = smul.addr %s195, 128
          %s197 = scalar_lea.hbm %s0, %s196
          %s199 = sshll.u32 %s191, 4
          %s200 = int_to_ptr.vmem [resolvable:$true] %s199
          %202 = dma.hbm_to_vmem [thread:$0]  %s197, 384, %s200, %s188
        $region36: #{tpu_custom_call.1} parent=31 // pred_fallthru
          _
      $region32: #{tpu_custom_call.1} parent=5 // pred_fallthru
        _
      %p203 = scmp.le.s32.totalorder 1, %s17
      %p204 = scmp.lt.s32.totalorder %s17, 3
      %p205 = pnand %p203, %p204
      %p206 = pneg %p205
      // Predicated region
      $region37: #{tpu_custom_call.1} parent=5 // pred_check
        _
      $region38: #{tpu_custom_call.1} parent=5 // pred_check_branch
        %208 = sbr.rel (%p205) target = $region40
      $region39: #{tpu_custom_call.1} parent=5 // pred_region
        %s209 = ssub.s32 %s17, 1
        %s210 = sand.u32 %s30, 1
        %s211 = scalar_lea.sflag [#allocation3], %s210
        %s212 = sand.u32 %s30, 1
        %s213 = smul.addr %s212, 24
        %s214 = scalar_lea.vmem [#allocation2], %s213
        // Predicated region
        $region41: #{tpu_custom_call.1} parent=39 // pred_check
          %p215 = pneg %p43
        $region42: #{tpu_custom_call.1} parent=39 // pred_check_branch
          %217 = sbr.rel (%p215) target = $region44
        $region43: #{tpu_custom_call.1} parent=39 // pred_region
          %218 = dma.done %s211, 384
        $region44: #{tpu_custom_call.1} parent=39 // pred_fallthru
          _
        %s219 = sand.u32 %s30, 1
        %s220 = scalar_lea.sflag [#allocation3], %s219
        %s221 = sand.u32 %s30, 1
        %s222 = smul.addr %s221, 24
        %s223 = scalar_lea.vmem [#allocation2], %s222
        %p224 = pneg %p43
        %p225 = pneg %p40
        %p226 = pneg %p64
        %p227 = pneg %p61
        %p228 = pneg %p85
        %p229 = pneg %p82
        %p230 = pneg %p106
        %p231 = pneg %p103
        %p232 = pneg %p127
        %p233 = pneg %p124
        %p234 = pneg %p153
        %p235 = pneg %p150
        %s236 = sand.u32 %s140, 1
        %s237 = scalar_lea.sflag [#allocation4], %s236
        %s238 = sand.u32 %s140, 1
        %s239 = smul.addr %s238, 24
        %s240 = scalar_lea.vmem [#allocation5], %s239
        %v242 = vld [vmem:[%s1] sm:$0xf]
        %v243 = vld [vmem:[%s1 + $0x4] sm:$0xf]
        %v244 = vld [vmem:[%s2] sm:$0xf]
        %v245 = vld [vmem:[%s2 + $0x4] sm:$0xf]
        %v246 = vld [vmem:[%s3] sm:$0xff]
        %v247 = vld [vmem:[%s3 + $0x8] sm:$0xff]
        %v248 = vld [vmem:[%s4] sm:$0x7]
        %v249 = vld [vmem:[%s214] sm:$0xff]
        %v250 = vld [vmem:[%s214 + $0x8] sm:$0xff]
        %v251 = vld [vmem:[%s214 + $0x10] sm:$0xff]
        %255 = vrot.lane.b32.xlu0 %v249, 127
        %v256 = vpop.permute.xlu0 %255
        %257 = vrot.lane.b32.xlu0 %v250, 127
        %v258 = vpop.permute.xlu0 %257
        %259 = vrot.lane.b32.xlu0 %v251, 127
        %v260 = vpop.permute.xlu0 %259
        %vm261 = vcmask 1039360
        %v262 = vsel %vm261, %v256, %v258
        %v263 = vsel %vm261, %v258, %v260
        %267 = vrot.lane.b32.xlu0 %v249, 126
        %v268 = vpop.permute.xlu0 %267
        %269 = vrot.lane.b32.xlu0 %v250, 126
        %v270 = vpop.permute.xlu0 %269
        %271 = vrot.lane.b32.xlu0 %v251, 126
        %v272 = vpop.permute.xlu0 %271
        %vm273 = vcmask 1031168
        %v274 = vsel %vm273, %v268, %v270
        %v275 = vsel %vm273, %v270, %v272
        %279 = vrot.lane.b32.xlu0 %v249, 110
        %v280 = vpop.permute.xlu0 %279
        %281 = vrot.lane.b32.xlu0 %v250, 110
        %v282 = vpop.permute.xlu0 %281
        %283 = vrot.lane.b32.xlu0 %v251, 110
        %v284 = vpop.permute.xlu0 %283
        %vm285 = vcmask 900096
        %v286 = vsel %vm285, %v280, %v282
        %v287 = vsel %vm285, %v282, %v284
        %291 = vrot.lane.b32.xlu0 %v249, 109
        %v292 = vpop.permute.xlu0 %291
        %293 = vrot.lane.b32.xlu0 %v250, 109
        %v294 = vpop.permute.xlu0 %293
        %295 = vrot.lane.b32.xlu0 %v251, 109
        %v296 = vpop.permute.xlu0 %295
        %vm297 = vcmask 891904
        %v298 = vsel %vm297, %v292, %v294
        %v299 = vsel %vm297, %v294, %v296
        %303 = vrot.lane.b32.xlu0 %v249, 108
        %v304 = vpop.permute.xlu0 %303
        %305 = vrot.lane.b32.xlu0 %v250, 108
        %v306 = vpop.permute.xlu0 %305
        %307 = vrot.lane.b32.xlu0 %v251, 108
        %v308 = vpop.permute.xlu0 %307
        %vm309 = vcmask 883712
        %v310 = vsel %vm309, %v304, %v306
        %v311 = vsel %vm309, %v306, %v308
        %315 = vrot.lane.b32.xlu0 %v249, 92
        %v316 = vpop.permute.xlu0 %315
        %317 = vrot.lane.b32.xlu0 %v250, 92
        %v318 = vpop.permute.xlu0 %317
        %319 = vrot.lane.b32.xlu0 %v251, 92
        %v320 = vpop.permute.xlu0 %319
        %vm321 = vcmask 752640
        %v322 = vsel %vm321, %v316, %v318
        %v323 = vsel %vm321, %v318, %v320
        %327 = vrot.lane.b32.xlu0 %v249, 91
        %v328 = vpop.permute.xlu0 %327
        %329 = vrot.lane.b32.xlu0 %v250, 91
        %v330 = vpop.permute.xlu0 %329
        %331 = vrot.lane.b32.xlu0 %v251, 91
        %v332 = vpop.permute.xlu0 %331
        %vm333 = vcmask 744448
        %v334 = vsel %vm333, %v328, %v330
        %v335 = vsel %vm333, %v330, %v332
        %339 = vrot.lane.b32.xlu0 %v249, 90
        %v340 = vpop.permute.xlu0 %339
        %341 = vrot.lane.b32.xlu0 %v250, 90
        %v342 = vpop.permute.xlu0 %341
        %343 = vrot.lane.b32.xlu0 %v251, 90
        %v344 = vpop.permute.xlu0 %343
        %vm345 = vcmask 736256
        %v346 = vsel %vm345, %v340, %v342
        %v347 = vsel %vm345, %v342, %v344
        %v351 = vpack.c.bf16 %v262, %v249
        %v352 = vpack.c.bf16 %v263, %v250
        %v353 = vpack.c.bf16 %v260, %v251
        %v354 = vpack.c.bf16 %v286, %v274
        %v355 = vpack.c.bf16 %v287, %v275
        %v356 = vpack.c.bf16 %v284, %v272
        %v357 = vpack.c.bf16 %v310, %v298
        %v358 = vpack.c.bf16 %v311, %v299
        %v359 = vpack.c.bf16 %v308, %v296
        %v360 = vpack.c.bf16 %v334, %v322
        %v361 = vpack.c.bf16 %v335, %v323
        %v362 = vpack.c.bf16 %v332, %v320
        %v363 = vpack.c.bf16 %v346, %v346
        %v364 = vpack.c.bf16 %v347, %v347
        %v365 = vpack.c.bf16 %v344, %v344
        %367 = vset.pattern.permute.xlu0 0
        %368 = vperm.xlu0 %367, %v246
        %v369 = vpop.permute.xlu0 %368
        %372 = vset.pattern.permute.xlu0 0
        %373 = vperm.xlu0 %372, %v247
        %v374 = vpop.permute.xlu0 %373
        %v378 = vunpack.c.l.b16 %v242
        %v379 = vunpack.c.l.b16 %v243
        %v380 = vpack.c.b16 %v379, %v378
        %vm381 = vcmask 588800
        %v383 = vsel %vm381, %v380, 0
        %vm385 = vcmask 1043456
        %v387 = vsel %vm385, %v363, 0
        %v390 = vsel %vm385, %v364, 0
        %v393 = vsel %vm385, %v365, 0
        %395 = vmatprep.subr.bf16.mxu0 %v352
        %396 = vmatpush1.bf16.msra.mxu0 %v351
        %397 = vmatprep.subr.bf16.mxu0 %v355
        %398 = vmatpush1.bf16.msra.mxu0 %v354
        %399 = vmatprep.subr.bf16.mxu0 %v358
        %400 = vmatpush1.bf16.msra.mxu0 %v357
        %401 = vmatprep.subr.bf16.mxu0 %v361
        %402 = vmatpush1.bf16.msra.mxu0 %v360
        %403 = vmatprep.subr.bf16.mxu0 %v390
        %404 = vmatpush1.bf16.msra.mxu0 %v387
        %405 = vmatprep.subr.bf16.mxu0 0
        %406 = vmatpush1.bf16.msra.mxu0 0
        %407 = vmatprep.subr.bf16.mxu0 0
        %408 = vmatpush1.bf16.msra.mxu0 0
        %409 = vmatprep.subr.bf16.mxu0 0
        %410 = vmatpush1.bf16.msra.mxu0 0
        %411 = vmatprep.subr.bf16.mxu0 0
        %412 = vmatpush1.bf16.msra.mxu0 0
        %413 = vmatprep.subr.bf16.mxu0 0
        %414 = vmatpush1.bf16.msra.mxu0 0
        %415 = vmatprep.subr.bf16.mxu0 0
        %416 = vmatpush1.bf16.msra.mxu0 0
        %417 = vmatprep.subr.bf16.mxu0 0
        %418 = vmatpush1.bf16.msra.mxu0 0
        %419 = vmatprep.subr.bf16.mxu0 0
        %420 = vmatpush1.bf16.msra.mxu0 0
        %421 = vmatprep.subr.bf16.mxu0 0
        %422 = vmatpush1.bf16.msra.mxu0 0
        %423 = vmatprep.subr.bf16.mxu0 0
        %424 = vmatpush1.bf16.msra.mxu0 0
        %425 = vmatprep.subr.bf16.mxu0 0
        %426 = vmatpush1.bf16.msra.mxu0 0
        %427 = vmatprep.mubr.bf16.mxu0 0
        %428 = vmatmul.mubr.bf16.gmra.mrb[0].mxu0 %v383
        %v429 = vpop.f32.mrb[0].mxu0
        %v430 = vadd.f32 %v369, %v429
        %v431 = vpop.f32.mrb[0].mxu0
        %v432 = vadd.f32 %v369, %v431
        %v433 = vpop.f32.mrb[0].mxu0
        %v434 = vadd.f32 %v374, %v433
        %v435 = vpop.f32.mrb[0].mxu0
        %v436 = vadd.f32 %v374, %v435
        %437 = vdwg.mxu0
        %438 = vmatprep.subr.bf16.mxu0 0
        %439 = vmatpush1.bf16.msra.mxu0 %v353
        %440 = vmatprep.subr.bf16.mxu0 0
        %441 = vmatpush1.bf16.msra.mxu0 %v356
        %442 = vmatprep.subr.bf16.mxu0 0
        %443 = vmatpush1.bf16.msra.mxu0 %v359
        %444 = vmatprep.subr.bf16.mxu0 0
        %445 = vmatpush1.bf16.msra.mxu0 %v362
        %446 = vmatprep.subr.bf16.mxu0 0
        %447 = vmatpush1.bf16.msra.mxu0 %v393
        %448 = vmatprep.subr.bf16.mxu0 0
        %449 = vmatpush1.bf16.msra.mxu0 0
        %450 = vmatprep.subr.bf16.mxu0 0
        %451 = vmatpush1.bf16.msra.mxu0 0
        %452 = vmatprep.subr.bf16.mxu0 0
        %453 = vmatpush1.bf16.msra.mxu0 0
        %454 = vmatprep.subr.bf16.mxu0 0
        %455 = vmatpush1.bf16.msra.mxu0 0
        %456 = vmatprep.subr.bf16.mxu0 0
        %457 = vmatpush1.bf16.msra.mxu0 0
        %458 = vmatprep.subr.bf16.mxu0 0
        %459 = vmatpush1.bf16.msra.mxu0 0
        %460 = vmatprep.subr.bf16.mxu0 0
        %461 = vmatpush1.bf16.msra.mxu0 0
        %462 = vmatprep.subr.bf16.mxu0 0
        %463 = vmatpush1.bf16.msra.mxu0 0
        %464 = vmatprep.subr.bf16.mxu0 0
        %465 = vmatpush1.bf16.msra.mxu0 0
        %466 = vmatprep.subr.bf16.mxu0 0
        %467 = vmatpush1.bf16.msra.mxu0 0
        %468 = vmatprep.subr.bf16.mxu0 0
        %469 = vmatpush1.bf16.msra.mxu0 0
        %470 = vmatprep.mubr.bf16.mxu0 0
        %471 = vmatmul.mubr.bf16.gmra.mrb[0].mxu0 %v383
        %v472 = vpop.f32.mrb[0].mxu0
        %v473 = vadd.f32 %v369, %v472
        %v474 = vpop.f32.mrb[0].mxu0
        %v475 = vpop.f32.mrb[0].mxu0
        %v476 = vadd.f32 %v374, %v475
        %v477 = vpop.f32.mrb[0].mxu0
        %478 = vdwg.mxu0
        %v480 = vlaneseq
        %v481 = vshrl.u32 %v480, 7
        %v482 = vsub.s32 0, %v481
        %v483 = vrot.slane %v248, %v482
        %v484 = vlaneseq
        %v485 = vshrl.u32 %v484, 7
        %v486 = vsub.s32 1, %v485
        %v487 = vrot.slane %v248, %v486
        %v488 = vlaneseq
        %v489 = vshrl.u32 %v488, 7
        %v490 = vsub.s32 2, %v489
        %v491 = vrot.slane %v248, %v490
        %v495 = vmul.f32 %v430, %v483
        %v496 = vmul.f32 %v432, %v487
        %v497 = vmul.f32 %v473, %v491
        %v498 = vmul.f32 %v434, %v483
        %v499 = vmul.f32 %v436, %v487
        %v500 = vmul.f32 %v476, %v491
        %v501 = vadd.f32 %v495, %v496
        %vm502 = vcmask 556032
        %v503 = vsel %vm502, %v497, 0.0
        %v504 = vadd.f32 %v501, %v503
        %505 = vadd.xlane.f32.xlu0 %v504
        %v506 = vpop.xlane.xlu0 %505
        %v507 = vadd.f32 %v498, %v499
        %v508 = vsel %vm502, %v500, 0.0
        %v509 = vadd.f32 %v507, %v508
        %510 = vadd.xlane.f32.xlu0 %v509
        %v511 = vpop.xlane.xlu0 %510
        %v512 = vmul.f32 %v506, 0.00390625
        %v513 = vmul.f32 %v511, 0.00390625
        %v514 = vsub.f32 %v430, %v512
        %v515 = vsub.f32 %v432, %v512
        %v516 = vsub.f32 %v473, %v512
        %v517 = vsub.f32 %v434, %v513
        %v518 = vsub.f32 %v436, %v513
        %v519 = vsub.f32 %v476, %v513
        %v520 = vmul.f32 %v514, %v483
        %v521 = vmul.f32 %v515, %v487
        %v522 = vmul.f32 %v516, %v491
        %v523 = vmul.f32 %v517, %v483
        %v524 = vmul.f32 %v518, %v487
        %v525 = vmul.f32 %v519, %v491
        %v526 = vmul.f32 %v520, %v520
        %v527 = vmul.f32 %v521, %v521
        %v528 = vmul.f32 %v522, %v522
        %v529 = vmul.f32 %v523, %v523
        %v530 = vmul.f32 %v524, %v524
        %v531 = vmul.f32 %v525, %v525
        %v532 = vadd.f32 %v526, %v527
        %v533 = vsel %vm502, %v528, 0.0
        %v534 = vadd.f32 %v532, %v533
        %535 = vadd.xlane.f32.xlu0 %v534
        %v536 = vpop.xlane.xlu0 %535
        %v537 = vadd.f32 %v529, %v530
        %v538 = vsel %vm502, %v531, 0.0
        %v539 = vadd.f32 %v537, %v538
        %540 = vadd.xlane.f32.xlu0 %v539
        %v541 = vpop.xlane.xlu0 %540
        %v542 = vmul.f32 %v536, 0.00390625
        %v543 = vmul.f32 %v541, 0.00390625
        %v544 = vadd.f32 %v542, 1e-05
        %v545 = vadd.f32 %v543, 1e-05
        %v546 = vrsqrt.pop %v544
        %v547 = vrsqrt.pop %v545
        %v548 = vmul.f32 %v514, %v546
        %v549 = vmul.f32 %v515, %v546
        %v550 = vmul.f32 %v516, %v546
        %v551 = vmul.f32 %v517, %v547
        %v552 = vmul.f32 %v518, %v547
        %v553 = vmul.f32 %v519, %v547
        %554 = vset.pattern.permute.xlu0 1
        %555 = vperm.xlu0 %554, %v246
        %v556 = vpop.permute.xlu0 %555
        %558 = vset.pattern.permute.xlu0 1
        %559 = vperm.xlu0 %558, %v247
        %v560 = vpop.permute.xlu0 %559
        %v562 = vmul.f32 %v548, %v556
        %v563 = vmul.f32 %v549, %v556
        %v564 = vmul.f32 %v550, %v556
        %v565 = vmul.f32 %v551, %v560
        %v566 = vmul.f32 %v552, %v560
        %v567 = vmul.f32 %v553, %v560
        %568 = vset.pattern.permute.xlu0 2
        %569 = vperm.xlu0 %568, %v246
        %v570 = vpop.permute.xlu0 %569
        %572 = vset.pattern.permute.xlu0 2
        %573 = vperm.xlu0 %572, %v247
        %v574 = vpop.permute.xlu0 %573
        %v576 = vadd.f32 %v562, %v570
        %v577 = vadd.f32 %v563, %v570
        %v578 = vadd.f32 %v564, %v570
        %v579 = vadd.f32 %v565, %v574
        %v580 = vadd.f32 %v566, %v574
        %v581 = vadd.f32 %v567, %v574
        %vm582 = vcmp.ge.f32.partialorder %v576, 0.0
        %vm583 = vcmp.ge.f32.partialorder %v577, 0.0
        %vm584 = vcmp.ge.f32.partialorder %v578, 0.0
        %vm585 = vcmp.ge.f32.partialorder %v579, 0.0
        %vm586 = vcmp.ge.f32.partialorder %v580, 0.0
        %vm587 = vcmp.ge.f32.partialorder %v581, 0.0
        %v588 = vmul.f32 %v576, 0.01
        %v589 = vmul.f32 %v577, 0.01
        %v590 = vmul.f32 %v578, 0.01
        %v591 = vmul.f32 %v579, 0.01
        %v592 = vmul.f32 %v580, 0.01
        %v593 = vmul.f32 %v581, 0.01
        %v594 = vsel %vm582, %v576, %v588
        %v595 = vsel %vm583, %v577, %v589
        %v596 = vsel %vm584, %v578, %v590
        %v597 = vsel %vm585, %v579, %v591
        %v598 = vsel %vm586, %v580, %v592
        %v599 = vsel %vm587, %v581, %v593
        %v600 = vpack.c.bf16 %v597, %v594
        %v601 = vpack.c.bf16 %v598, %v595
        %v602 = vpack.c.bf16 %v599, %v596
        %603 = vset.pattern.permute.xlu0 3
        %604 = vperm.xlu0 %603, %v246
        %v605 = vpop.permute.xlu0 %604
        %607 = vset.pattern.permute.xlu0 3
        %608 = vperm.xlu0 %607, %v247
        %v609 = vpop.permute.xlu0 %608
        %v613 = vunpack.c.l.b16 %v244
        %v614 = vunpack.c.l.b16 %v245
        %v615 = vpack.c.b16 %v614, %v613
        %vm616 = vcmask 130048
        %v618 = vsel %vm616, %v615, 0
        %620 = vmatprep.subr.bf16.mxu0 %v601
        %621 = vmatpush1.bf16.msra.mxu0 %v600
        %622 = vmatprep.subr.bf16.mxu0 0
        %623 = vmatpush1.bf16.msra.mxu0 0
        %624 = vmatprep.subr.bf16.mxu0 0
        %625 = vmatpush1.bf16.msra.mxu0 0
        %626 = vmatprep.subr.bf16.mxu0 0
        %627 = vmatpush1.bf16.msra.mxu0 0
        %628 = vmatprep.subr.bf16.mxu0 0
        %629 = vmatpush1.bf16.msra.mxu0 0
        %630 = vmatprep.subr.bf16.mxu0 0
        %631 = vmatpush1.bf16.msra.mxu0 0
        %632 = vmatprep.subr.bf16.mxu0 0
        %633 = vmatpush1.bf16.msra.mxu0 0
        %634 = vmatprep.subr.bf16.mxu0 0
        %635 = vmatpush1.bf16.msra.mxu0 0
        %636 = vmatprep.subr.bf16.mxu0 0
        %637 = vmatpush1.bf16.msra.mxu0 0
        %638 = vmatprep.subr.bf16.mxu0 0
        %639 = vmatpush1.bf16.msra.mxu0 0
        %640 = vmatprep.subr.bf16.mxu0 0
        %641 = vmatpush1.bf16.msra.mxu0 0
        %642 = vmatprep.subr.bf16.mxu0 0
        %643 = vmatpush1.bf16.msra.mxu0 0
        %644 = vmatprep.subr.bf16.mxu0 0
        %645 = vmatpush1.bf16.msra.mxu0 0
        %646 = vmatprep.subr.bf16.mxu0 0
        %647 = vmatpush1.bf16.msra.mxu0 0
        %648 = vmatprep.subr.bf16.mxu0 0
        %649 = vmatpush1.bf16.msra.mxu0 0
        %650 = vmatprep.subr.bf16.mxu0 0
        %651 = vmatpush1.bf16.msra.mxu0 0
        %652 = vmatprep.mubr.bf16.mxu0 0
        %653 = vmatmul.mubr.bf16.gmra.mrb[0].mxu0 %v618
        %v654 = vpop.f32.mrb[0].mxu0
        %v655 = vadd.f32 %v605, %v654
        %v656 = vpop.f32.mrb[0].mxu0
        %v657 = vadd.f32 %v605, %v656
        %v658 = vpop.f32.mrb[0].mxu0
        %v659 = vadd.f32 %v609, %v658
        %v660 = vpop.f32.mrb[0].mxu0
        %v661 = vadd.f32 %v609, %v660
        %662 = vdwg.mxu0
        %663 = vmatprep.subr.bf16.mxu0 0
        %664 = vmatpush1.bf16.msra.mxu0 %v602
        %665 = vmatprep.subr.bf16.mxu0 0
        %666 = vmatpush1.bf16.msra.mxu0 0
        %667 = vmatprep.subr.bf16.mxu0 0
        %668 = vmatpush1.bf16.msra.mxu0 0
        %669 = vmatprep.subr.bf16.mxu0 0
        %670 = vmatpush1.bf16.msra.mxu0 0
        %671 = vmatprep.subr.bf16.mxu0 0
        %672 = vmatpush1.bf16.msra.mxu0 0
        %673 = vmatprep.subr.bf16.mxu0 0
        %674 = vmatpush1.bf16.msra.mxu0 0
        %675 = vmatprep.subr.bf16.mxu0 0
        %676 = vmatpush1.bf16.msra.mxu0 0
        %677 = vmatprep.subr.bf16.mxu0 0
        %678 = vmatpush1.bf16.msra.mxu0 0
        %679 = vmatprep.subr.bf16.mxu0 0
        %680 = vmatpush1.bf16.msra.mxu0 0
        %681 = vmatprep.subr.bf16.mxu0 0
        %682 = vmatpush1.bf16.msra.mxu0 0
        %683 = vmatprep.subr.bf16.mxu0 0
        %684 = vmatpush1.bf16.msra.mxu0 0
        %685 = vmatprep.subr.bf16.mxu0 0
        %686 = vmatpush1.bf16.msra.mxu0 0
        %687 = vmatprep.subr.bf16.mxu0 0
        %688 = vmatpush1.bf16.msra.mxu0 0
        %689 = vmatprep.subr.bf16.mxu0 0
        %690 = vmatpush1.bf16.msra.mxu0 0
        %691 = vmatprep.subr.bf16.mxu0 0
        %692 = vmatpush1.bf16.msra.mxu0 0
        %693 = vmatprep.subr.bf16.mxu0 0
        %694 = vmatpush1.bf16.msra.mxu0 0
        %695 = vmatprep.mubr.bf16.mxu0 0
        %696 = vmatmul.mubr.bf16.gmra.mrb[0].mxu0 %v618
        %v697 = vpop.f32.mrb[0].mxu0
        %v698 = vadd.f32 %v605, %v697
        %v699 = vpop.f32.mrb[0].mxu0
        %v700 = vpop.f32.mrb[0].mxu0
        %v701 = vadd.f32 %v609, %v700
        %v702 = vpop.f32.mrb[0].mxu0
        %703 = vdwg.mxu0
        %v704 = vmul.f32 %v655, %v483
        %v705 = vmul.f32 %v657, %v487
        %v706 = vmul.f32 %v698, %v491
        %v707 = vmul.f32 %v659, %v483
        %v708 = vmul.f32 %v661, %v487
        %v709 = vmul.f32 %v701, %v491
        %v710 = vadd.f32 %v704, %v705
        %v711 = vsel %vm502, %v706, 0.0
        %v712 = vadd.f32 %v710, %v711
        %713 = vadd.xlane.f32.xlu0 %v712
        %v714 = vpop.xlane.xlu0 %713
        %v715 = vadd.f32 %v707, %v708
        %v716 = vsel %vm502, %v709, 0.0
        %v717 = vadd.f32 %v715, %v716
        %718 = vadd.xlane.f32.xlu0 %v717
        %v719 = vpop.xlane.xlu0 %718
        %v720 = vmul.f32 %v714, 0.00390625
        %v721 = vmul.f32 %v719, 0.00390625
        %v722 = vsub.f32 %v655, %v720
        %v723 = vsub.f32 %v657, %v720
        %v724 = vsub.f32 %v698, %v720
        %v725 = vsub.f32 %v659, %v721
        %v726 = vsub.f32 %v661, %v721
        %v727 = vsub.f32 %v701, %v721
        %v728 = vmul.f32 %v722, %v483
        %v729 = vmul.f32 %v723, %v487
        %v730 = vmul.f32 %v724, %v491
        %v731 = vmul.f32 %v725, %v483
        %v732 = vmul.f32 %v726, %v487
        %v733 = vmul.f32 %v727, %v491
        %v734 = vmul.f32 %v728, %v728
        %v735 = vmul.f32 %v729, %v729
        %v736 = vmul.f32 %v730, %v730
        %v737 = vmul.f32 %v731, %v731
        %v738 = vmul.f32 %v732, %v732
        %v739 = vmul.f32 %v733, %v733
        %v740 = vadd.f32 %v734, %v735
        %v741 = vsel %vm502, %v736, 0.0
        %v742 = vadd.f32 %v740, %v741
        %743 = vadd.xlane.f32.xlu0 %v742
        %v744 = vpop.xlane.xlu0 %743
        %v745 = vadd.f32 %v737, %v738
        %v746 = vsel %vm502, %v739, 0.0
        %v747 = vadd.f32 %v745, %v746
        %748 = vadd.xlane.f32.xlu0 %v747
        %v749 = vpop.xlane.xlu0 %748
        %v750 = vmul.f32 %v744, 0.00390625
        %v751 = vmul.f32 %v749, 0.00390625
        %v752 = vadd.f32 %v750, 1e-05
        %v753 = vadd.f32 %v751, 1e-05
        %v754 = vrsqrt.pop %v752
        %v755 = vrsqrt.pop %v753
        %v756 = vmul.f32 %v722, %v754
        %v757 = vmul.f32 %v723, %v754
        %v758 = vmul.f32 %v724, %v754
        %v759 = vmul.f32 %v725, %v755
        %v760 = vmul.f32 %v726, %v755
        %v761 = vmul.f32 %v727, %v755
        %762 = vset.pattern.permute.xlu0 4
        %763 = vperm.xlu0 %762, %v246
        %v764 = vpop.permute.xlu0 %763
        %766 = vset.pattern.permute.xlu0 4
        %767 = vperm.xlu0 %766, %v247
        %v768 = vpop.permute.xlu0 %767
        %v770 = vmul.f32 %v756, %v764
        %v771 = vmul.f32 %v757, %v764
        %v772 = vmul.f32 %v758, %v764
        %v773 = vmul.f32 %v759, %v768
        %v774 = vmul.f32 %v760, %v768
        %v775 = vmul.f32 %v761, %v768
        %776 = vset.pattern.permute.xlu0 5
        %777 = vperm.xlu0 %776, %v246
        %v778 = vpop.permute.xlu0 %777
        %780 = vset.pattern.permute.xlu0 5
        %781 = vperm.xlu0 %780, %v247
        %v782 = vpop.permute.xlu0 %781
        %v784 = vadd.f32 %v770, %v778
        %v785 = vadd.f32 %v771, %v778
        %v786 = vadd.f32 %v772, %v778
        %v787 = vadd.f32 %v773, %v782
        %v788 = vadd.f32 %v774, %v782
        %v789 = vadd.f32 %v775, %v782
        %v790 = vadd.f32 %v784, %v298
        %v791 = vadd.f32 %v785, %v299
        %v792 = vadd.f32 %v786, %v296
        %v793 = vadd.f32 %v790, %v787
        %v794 = vadd.f32 %v791, %v788
        %v795 = vadd.f32 %v792, %v789
        %vm796 = vcmp.ge.f32.partialorder %v793, 0.0
        %vm797 = vcmp.ge.f32.partialorder %v794, 0.0
        %vm798 = vcmp.ge.f32.partialorder %v795, 0.0
        %v799 = vmul.f32 %v793, 0.01
        %v800 = vmul.f32 %v794, 0.01
        %v801 = vmul.f32 %v795, 0.01
        %v802 = vsel %vm796, %v793, %v799
        %v803 = vsel %vm797, %v794, %v800
        %v804 = vsel %vm798, %v795, %v801
        %805 = vst [vmem:[%s240] sm:$0xff] %v802
        %806 = vst [vmem:[%s240 + $0x8] sm:$0xff] %v803
        %807 = vst.msk [vmem:[%s240 + $0x10] sm:$0xff] %vm502, %v804
        %s808 = sand.u32 %s140, 1
        %s809 = scalar_lea.sflag [#allocation4], %s808
        %s810 = sand.u32 %s140, 1
        %s811 = smul.addr %s810, 24
        %s812 = scalar_lea.vmem [#allocation5], %s811
        // Predicated region
        $region45: #{tpu_custom_call.1} parent=39 // pred_check
          %p813 = pneg %p150
        $region46: #{tpu_custom_call.1} parent=39 // pred_check_branch
          %815 = sbr.rel (%p813) target = $region48
        $region47: #{tpu_custom_call.1} parent=39 // pred_region
          %s817 = ssub.s32 384, 384
          %818 = vsyncadd %s809, %s817
          %s819 = smul.addr %s22, 3
          %s820 = smul.addr %s819, 128
          %s821 = scalar_lea.hbm %s5, %s820
          %s823 = sshll.u32 %s812, 4
          %s824 = int_to_ptr.vmem [resolvable:$true] %s823
          %826 = dma.vmem_to_hbm [thread:$0]  %s824, 384, %s821, %s809
        $region48: #{tpu_custom_call.1} parent=39 // pred_fallthru
          _
      $region40: #{tpu_custom_call.1} parent=5 // pred_fallthru
        _
      %p827 = scmp.le.s32.totalorder 2, %s17
      // Predicated region
      $region49: #{tpu_custom_call.1} parent=5 // pred_check
        %p828 = pneg %p827
      $region50: #{tpu_custom_call.1} parent=5 // pred_check_branch
        %830 = sbr.rel (%p828) target = $region52
      $region51: #{tpu_custom_call.1} parent=5 // pred_region
        %s831 = ssub.s32 %s17, 2
        // Predicated region
        $region53: #{tpu_custom_call.1} parent=51 // pred_check
          %p832 = pneg %p156
        $region54: #{tpu_custom_call.1} parent=51 // pred_check_branch
          %834 = sbr.rel (%p832) target = $region56
        $region55: #{tpu_custom_call.1} parent=51 // pred_region
          %s835 = sand.u32 %s141, 1
          %s836 = scalar_lea.sflag [#allocation4], %s835
          %s837 = sand.u32 %s141, 1
          %s838 = smul.addr %s837, 24
          %s839 = scalar_lea.vmem [#allocation5], %s838
          %840 = dma.done %s836, 384
        $region56: #{tpu_custom_call.1} parent=51 // pred_fallthru
          _
      $region52: #{tpu_custom_call.1} parent=5 // pred_fallthru
        _
    $region6: #{tpu_custom_call.1} parent=1 // loop_footer
      %s21 = sadd.s32 1, %s17
    $region7: #{tpu_custom_call.1} parent=1 // loop_footer_branch
      %16 = sbr.rel target = $region3
    $region8: #{tpu_custom_call.1} parent=1 // loop_exit
      _
    %841 = vsyncpa [#allocation3], 1
    %s842 = scalar_lea.sflag [#allocation3], 1
    %843 = vsyncpa %s842, 1
    %844 = vsyncpa [#allocation4], 1
    %s845 = scalar_lea.sflag [#allocation4], 1
    %846 = vsyncpa %s845, 1

</llo_original>
